<compile_context>
chip_gen: v6e
topology: v6e:2x2x1
jax: 0.10.0
libtpu: 0.0.40
codegen_flags: <defaults>
</compile_context>

<pallas_src>
from functools import partial

import jax
import jax.numpy as jnp
from jax import lax
from jax.experimental import pallas as pl
from jax.experimental.pallas import tpu as pltpu


# ----------------------------------------------------------------------------
# Kernel
# ----------------------------------------------------------------------------
def _topk_routing_kernel(q_ref, k_ref, w_ref, idx_ref, *, scale, topk, nb,
                         scale_after):
    """One (batch-block, query-tile) grid step.

    q_ref:   (NB, TQ, C)     query tile(s), native dtype
    k_ref:   (NB, P2, C)     full key set per batch element (VMEM-resident)
    w_ref:   (NB, topk, TQ)  routing weights, lane-dense (transposed) layout
    idx_ref: (NB, topk, TQ)  top-k key indices (int32, descending by logit)
    """
    p2 = k_ref.shape[1]
    tq = q_ref.shape[1]
    big_i32 = jnp.int32(2147483647)
    neg_inf = jnp.float32(-jnp.inf)
    # Hoisted: JAX does not CSE broadcast_in_dim across the unrolled batch loop.
    row_ids = lax.broadcasted_iota(jnp.int32, (p2, tq), 0)

    for b in range(nb):  # static unroll over the small batch block
        q = q_ref[b]  # (TQ, C)
        k = k_ref[b]  # (P2, C)

        # Transposed logits tile (P2, TQ) = k @ q^T: per-query results land on
        # lane rows, so the top-k passes and the stores are lane-dense and no
        # in-kernel transpose is ever needed. MXU accumulates in f32.
        logits = lax.dot_general(
            k, q, (((1,), (1,)), ((), ())), preferred_element_type=jnp.float32
        )
        if not scale_after:  # non-positive user scale: must scale before top-k
            logits = logits * jnp.float32(scale)

        # Iterative masked argmax along the key axis (axis 0). topk is small
        # (default 4) so this is a short fully-unrolled loop; tie-break is the
        # lowest index (matches lax.top_k).
        cur = logits
        val_rows = []
        idx_rows = []
        for _ in range(topk):
            m = jnp.max(cur, axis=0, keepdims=True)                     # (1, TQ)
            hit = cur == m
            i = jnp.min(jnp.where(hit, row_ids, big_i32), axis=0,
                        keepdims=True)                                  # (1, TQ)
            val_rows.append(m)
            idx_rows.append(i)
            cur = jnp.where(row_ids == i, neg_inf, cur)

        topv = jnp.concatenate(val_rows, axis=0)   # (topk, TQ), descending rows
        topi = jnp.concatenate(idx_rows, axis=0)   # (topk, TQ) int32

        # Softmax over the top-k values. Row 0 is already the max; a positive
        # temperature is order-invariant so it is applied after selection.
        z = topv - topv[0:1, :]
        if scale_after:
            z = z * jnp.float32(scale)
        e = jnp.exp(z)
        w = e / jnp.sum(e, axis=0, keepdims=True)

        w_ref[b] = w.astype(w_ref.dtype)
        idx_ref[b] = topi


# ----------------------------------------------------------------------------
# Wrapper
# ----------------------------------------------------------------------------
def topk_routing(query, key, *, topk=4, qk_scale=None, tile_q=None,
                 batch_block=None):
    """query, key: (n, p2, qk_dim).

    Returns (r_weight (n, p2, topk) [query dtype], topk_index (n, p2, topk) i32),
    matching TopkRouting.forward with param_routing=False.
    """
    assert query.ndim == 3 and key.ndim == 3
    n, p2_q, c = query.shape
    n_k, p2_k, c_k = key.shape
    assert n == n_k and c == c_k
    assert 1 <= topk <= p2_k

    scale = float(qk_scale) if qk_scale is not None else float(c) ** -0.5
    scale_after = scale > 0.0  # order-invariant only for positive temperature

    # Query tile = output lane dim: multiple of 128 so stores are unmasked
    # full-width vst, and the (P2, TQ) top-k working set stays ~vreg-resident.
    if tile_q is None:
        tile_q = 128
    tile_q = max(128, ((int(tile_q) + 127) // 128) * 128)
    p2_pad = pl.cdiv(p2_q, tile_q) * tile_q
    q_tiles = p2_pad // tile_q

    # Fold several batch elements into one grid step when the query axis fits
    # in a single tile (amortize per-step overhead), but keep >= 2 grid steps
    # so both v7x TensorCores get work.
    if batch_block is None:
        batch_block = min(8, max(1, n // 2)) if q_tiles == 1 else 1
    batch_block = max(1, min(int(batch_block), n))
    n_pad = pl.cdiv(n, batch_block) * batch_block

    qp = query
    if p2_pad != p2_q or n_pad != n:
        qp = jnp.pad(query, ((0, n_pad - n), (0, p2_pad - p2_q), (0, 0)))
    kp = key if n_pad == n else jnp.pad(key, ((0, n_pad - n), (0, 0), (0, 0)))

    grid = (n_pad // batch_block, q_tiles)
    kernel = partial(_topk_routing_kernel, scale=scale, topk=int(topk),
                     nb=batch_block, scale_after=scale_after)

    # VMEM budget (v7x: 64 MiB physical, 32 MiB scoped default).
    in_item = jnp.dtype(query.dtype).itemsize
    vmem_need = 2 * batch_block * (p2_k + tile_q) * c * in_item       # q/k double-buffers
    vmem_need += 2 * batch_block * topk * tile_q * (in_item + 4)      # output double-buffers
    vmem_need += 4 * p2_k * tile_q * 4                                # top-k working-set headroom
    vmem_limit = int(min(64 << 20, max(32 << 20, vmem_need + (8 << 20))))

    w_t, idx_t = pl.pallas_call(
        kernel,
        out_shape=(
            jax.ShapeDtypeStruct((n_pad, topk, p2_pad), query.dtype),
            jax.ShapeDtypeStruct((n_pad, topk, p2_pad), jnp.int32),
        ),
        grid=grid,
        in_specs=[
            # query: stream row tiles (lane dim of the transposed logits)
            pl.BlockSpec((batch_block, tile_q, c), lambda b, i: (b, i, 0)),
            # key: full set per batch block, constant along the query-tile axis
            pl.BlockSpec((batch_block, p2_k, c), lambda b, i: (b, 0, 0)),
        ],
        out_specs=(
            pl.BlockSpec((batch_block, topk, tile_q), lambda b, i: (b, 0, i)),
            pl.BlockSpec((batch_block, topk, tile_q), lambda b, i: (b, 0, i)),
        ),
        compiler_params=pltpu.CompilerParams(
            dimension_semantics=("parallel", "parallel"),
            vmem_limit_bytes=vmem_limit,
        ),
    )(qp, kp)

    # Back to the module's (n, p2, topk) layout (tiny arrays; cheap XLA op).
    w = jnp.transpose(w_t[:n, :, :p2_q], (0, 2, 1))
    idx = jnp.transpose(idx_t[:n, :, :p2_q], (0, 2, 1))
    return w, idx


# ----------------------------------------------------------------------------
# Pure-JAX reference (matches the PyTorch module with param_routing=False)
# ----------------------------------------------------------------------------
def _topk_routing_ref(query, key, topk, scale):
    logits = jnp.einsum(
        "bqc,bkc->bqk", query * scale, key, precision=lax.Precision.HIGHEST
    )
    v, i = lax.top_k(logits, topk)
    w = jax.nn.softmax(v, axis=-1)
    return w, i


if __name__ == "__main__":
    # Small shapes consistent with the module: n=2 "images", p2=64 regions,
    # qk_dim=32 feature dim, topk=4.
    n, p2, qk_dim, topk = 2, 64, 32, 4
    scale = qk_dim ** -0.5

    key0 = jax.random.PRNGKey(0)
    kq, kk = jax.random.split(key0)
    query = jax.random.normal(kq, (n, p2, qk_dim), jnp.float32)
    key = jax.random.normal(kk, (n, p2, qk_dim), jnp.float32)

    r_weight, topk_index = topk_routing(query, key, topk=topk)
    jax.block_until_ready((r_weight, topk_index))

    assert r_weight.shape == (n, p2, topk)
    assert topk_index.shape == (n, p2, topk)
    assert r_weight.dtype == jnp.float32
    assert topk_index.dtype == jnp.int32

    # Correctness vs. full-precision JAX reference.
    w_ref, i_ref = _topk_routing_ref(query, key, topk, scale)
    assert bool(jnp.all(topk_index == i_ref)), "top-k indices mismatch"
    assert bool(jnp.allclose(r_weight, w_ref, atol=2e-5, rtol=1e-4)), "weights mismatch"

    print("KERNEL_OK")
</pallas_src>

<mosaic_0001>
module attributes {stable_mosaic.version = 11 : i64} {
  func.func @_topk_routing_kernel(%arg0: i32, %arg1: i32, %arg2: memref<1x128x32xf32, #tpu.memory_space<vmem>>, %arg3: memref<1x64x32xf32, #tpu.memory_space<vmem>>, %arg4: memref<1x4x128xf32, #tpu.memory_space<vmem>>, %arg5: memref<1x4x128xi32, #tpu.memory_space<vmem>>) attributes {dimension_semantics = [#tpu.dimension_semantics<parallel>, #tpu.dimension_semantics<parallel>], iteration_bounds = array<i64: 2, 1>, scalar_prefetch = 0 : i64, scratch_operands = 0 : i64, tpu.core_type = #tpu.core_type<tc>, window_params = [{transform_indices = @transform_0, window_bounds = array<i64: 1, 128, 32>}, {transform_indices = @transform_1, window_bounds = array<i64: 1, 64, 32>}, {transform_indices = @transform_2, window_bounds = array<i64: 1, 4, 128>}, {transform_indices = @transform_3, window_bounds = array<i64: 1, 4, 128>}]} {
    %0 = tpu.iota {dimensions = array<i32: 0>} : vector<64x128xi32>
    %c0 = arith.constant 0 : index
    %c0_0 = arith.constant 0 : index
    %c0_1 = arith.constant 0 : index
    %1 = vector.load %arg2[%c0, %c0_0, %c0_1] : memref<1x128x32xf32, #tpu.memory_space<vmem>>, vector<1x128x32xf32>
    %2 = vector.shape_cast %1 : vector<1x128x32xf32> to vector<128x32xf32>
    %c0_2 = arith.constant 0 : index
    %c0_3 = arith.constant 0 : index
    %c0_4 = arith.constant 0 : index
    %3 = vector.load %arg3[%c0_2, %c0_3, %c0_4] : memref<1x64x32xf32, #tpu.memory_space<vmem>>, vector<1x64x32xf32>
    %4 = vector.shape_cast %3 : vector<1x64x32xf32> to vector<64x32xf32>
    %cst = arith.constant dense<0.000000e+00> : vector<64x128xf32>
    %5 = tpu.matmul %4, %2, %cst {dimension_numbers = #tpu.dot_dimension_numbers<[1], [1], [0], [0], [0, 0, 1, 0], [], []>} : vector<64x32xf32>, vector<128x32xf32>, vector<64x128xf32> -> vector<64x128xf32>
    %cst_5 = arith.constant dense<0xFF800000> : vector<128xf32>
    %6 = vector.multi_reduction <maximumf>, %5, %cst_5 [0] : vector<64x128xf32> to vector<128xf32>
    %7 = vector.shape_cast %6 : vector<128xf32> to vector<1x128xf32>
    %8 = vector.broadcast %7 : vector<1x128xf32> to vector<64x128xf32>
    %9 = arith.cmpf oeq, %5, %8 : vector<64x128xf32>
    %c2147483647_i32 = arith.constant 2147483647 : i32
    %10 = vector.broadcast %c2147483647_i32 : i32 to vector<64x128xi32>
    %11 = arith.select %9, %0, %10 : vector<64x128xi1>, vector<64x128xi32>
    %cst_6 = arith.constant dense<2147483647> : vector<128xi32>
    %12 = vector.multi_reduction <minsi>, %11, %cst_6 [0] : vector<64x128xi32> to vector<128xi32>
    %13 = vector.shape_cast %12 : vector<128xi32> to vector<1x128xi32>
    %14 = vector.broadcast %13 : vector<1x128xi32> to vector<64x128xi32>
    %15 = arith.cmpi eq, %0, %14 : vector<64x128xi32>
    %cst_7 = arith.constant 0xFF800000 : f32
    %16 = vector.broadcast %cst_7 : f32 to vector<64x128xf32>
    %17 = arith.select %15, %16, %5 : vector<64x128xi1>, vector<64x128xf32>
    %cst_8 = arith.constant dense<0xFF800000> : vector<128xf32>
    %18 = vector.multi_reduction <maximumf>, %17, %cst_8 [0] : vector<64x128xf32> to vector<128xf32>
    %19 = vector.shape_cast %18 : vector<128xf32> to vector<1x128xf32>
    %20 = vector.broadcast %19 : vector<1x128xf32> to vector<64x128xf32>
    %21 = arith.cmpf oeq, %17, %20 : vector<64x128xf32>
    %c2147483647_i32_9 = arith.constant 2147483647 : i32
    %22 = vector.broadcast %c2147483647_i32_9 : i32 to vector<64x128xi32>
    %23 = arith.select %21, %0, %22 : vector<64x128xi1>, vector<64x128xi32>
    %cst_10 = arith.constant dense<2147483647> : vector<128xi32>
    %24 = vector.multi_reduction <minsi>, %23, %cst_10 [0] : vector<64x128xi32> to vector<128xi32>
    %25 = vector.shape_cast %24 : vector<128xi32> to vector<1x128xi32>
    %26 = vector.broadcast %25 : vector<1x128xi32> to vector<64x128xi32>
    %27 = arith.cmpi eq, %0, %26 : vector<64x128xi32>
    %cst_11 = arith.constant 0xFF800000 : f32
    %28 = vector.broadcast %cst_11 : f32 to vector<64x128xf32>
    %29 = arith.select %27, %28, %17 : vector<64x128xi1>, vector<64x128xf32>
    %cst_12 = arith.constant dense<0xFF800000> : vector<128xf32>
    %30 = vector.multi_reduction <maximumf>, %29, %cst_12 [0] : vector<64x128xf32> to vector<128xf32>
    %31 = vector.shape_cast %30 : vector<128xf32> to vector<1x128xf32>
    %32 = vector.broadcast %31 : vector<1x128xf32> to vector<64x128xf32>
    %33 = arith.cmpf oeq, %29, %32 : vector<64x128xf32>
    %c2147483647_i32_13 = arith.constant 2147483647 : i32
    %34 = vector.broadcast %c2147483647_i32_13 : i32 to vector<64x128xi32>
    %35 = arith.select %33, %0, %34 : vector<64x128xi1>, vector<64x128xi32>
    %cst_14 = arith.constant dense<2147483647> : vector<128xi32>
    %36 = vector.multi_reduction <minsi>, %35, %cst_14 [0] : vector<64x128xi32> to vector<128xi32>
    %37 = vector.shape_cast %36 : vector<128xi32> to vector<1x128xi32>
    %38 = vector.broadcast %37 : vector<1x128xi32> to vector<64x128xi32>
    %39 = arith.cmpi eq, %0, %38 : vector<64x128xi32>
    %cst_15 = arith.constant 0xFF800000 : f32
    %40 = vector.broadcast %cst_15 : f32 to vector<64x128xf32>
    %41 = arith.select %39, %40, %29 : vector<64x128xi1>, vector<64x128xf32>
    %cst_16 = arith.constant dense<0xFF800000> : vector<128xf32>
    %42 = vector.multi_reduction <maximumf>, %41, %cst_16 [0] : vector<64x128xf32> to vector<128xf32>
    %43 = vector.shape_cast %42 : vector<128xf32> to vector<1x128xf32>
    %44 = vector.broadcast %43 : vector<1x128xf32> to vector<64x128xf32>
    %45 = arith.cmpf oeq, %41, %44 : vector<64x128xf32>
    %c2147483647_i32_17 = arith.constant 2147483647 : i32
    %46 = vector.broadcast %c2147483647_i32_17 : i32 to vector<64x128xi32>
    %47 = arith.select %45, %0, %46 : vector<64x128xi1>, vector<64x128xi32>
    %cst_18 = arith.constant dense<2147483647> : vector<128xi32>
    %48 = vector.multi_reduction <minsi>, %47, %cst_18 [0] : vector<64x128xi32> to vector<128xi32>
    %49 = vector.shape_cast %48 : vector<128xi32> to vector<1x128xi32>
    %50 = tpu.concatenate %7, %19, %31, %43 in 0 : vector<1x128xf32>, vector<1x128xf32>, vector<1x128xf32>, vector<1x128xf32> -> vector<4x128xf32>
    %51 = tpu.concatenate %13, %25, %37, %49 in 0 : vector<1x128xi32>, vector<1x128xi32>, vector<1x128xi32>, vector<1x128xi32> -> vector<4x128xi32>
    %52 = vector.extract_strided_slice %50 {offsets = [0, 0], sizes = [1, 128], strides = [1, 1]} : vector<4x128xf32> to vector<1x128xf32>
    %53 = vector.broadcast %52 : vector<1x128xf32> to vector<4x128xf32>
    %54 = arith.subf %50, %53 : vector<4x128xf32>
    %cst_19 = arith.constant 0.176776692 : f32
    %55 = vector.broadcast %cst_19 : f32 to vector<4x128xf32>
    %56 = arith.mulf %54, %55 : vector<4x128xf32>
    %57 = math.exp %56 : vector<4x128xf32>
    %cst_20 = arith.constant dense<0.000000e+00> : vector<128xf32>
    %58 = vector.multi_reduction <add>, %57, %cst_20 [0] : vector<4x128xf32> to vector<128xf32>
    %59 = vector.shape_cast %58 : vector<128xf32> to vector<1x128xf32>
    %60 = vector.broadcast %59 : vector<1x128xf32> to vector<4x128xf32>
    %61 = arith.divf %57, %60 : vector<4x128xf32>
    %c0_21 = arith.constant 0 : index
    %c0_22 = arith.constant 0 : index
    %c0_23 = arith.constant 0 : index
    %62 = vector.load %arg4[%c0_21, %c0_22, %c0_23] : memref<1x4x128xf32, #tpu.memory_space<vmem>>, vector<1x4x128xf32>
    %63 = vector.shape_cast %62 : vector<1x4x128xf32> to vector<4x128xf32>
    %64 = vector.shape_cast %61 : vector<4x128xf32> to vector<1x4x128xf32>
    tpu.vector_store %arg4[%c0_21, %c0_22, %c0_23], %64 {strides = array<i32>} : memref<1x4x128xf32, #tpu.memory_space<vmem>>, vector<1x4x128xf32>,
    %c0_24 = arith.constant 0 : index
    %c0_25 = arith.constant 0 : index
    %c0_26 = arith.constant 0 : index
    %65 = vector.load %arg5[%c0_24, %c0_25, %c0_26] : memref<1x4x128xi32, #tpu.memory_space<vmem>>, vector<1x4x128xi32>
    %66 = vector.shape_cast %65 : vector<1x4x128xi32> to vector<4x128xi32>
    %67 = vector.shape_cast %51 : vector<4x128xi32> to vector<1x4x128xi32>
    tpu.vector_store %arg5[%c0_24, %c0_25, %c0_26], %67 {strides = array<i32>} : memref<1x4x128xi32, #tpu.memory_space<vmem>>, vector<1x4x128xi32>,
    return
  }
  func.func @transform_0(%arg0: i32, %arg1: i32) -> (i32, i32, i32) {
    %c0_i32 = arith.constant 0 : i32
    %c0_i32_0 = arith.constant 0 : i32
    return %arg0, %arg1, %c0_i32 : i32, i32, i32
  }
  func.func @transform_1(%arg0: i32, %arg1: i32) -> (i32, i32, i32) {
    %c0_i32 = arith.constant 0 : i32
    %c0_i32_0 = arith.constant 0 : i32
    %c0_i32_1 = arith.constant 0 : i32
    return %arg0, %c0_i32, %c0_i32_0 : i32, i32, i32
  }
  func.func @transform_2(%arg0: i32, %arg1: i32) -> (i32, i32, i32) {
    %c0_i32 = arith.constant 0 : i32
    %c0_i32_0 = arith.constant 0 : i32
    return %arg0, %c0_i32, %arg1 : i32, i32, i32
  }
  func.func @transform_3(%arg0: i32, %arg1: i32) -> (i32, i32, i32) {
    %c0_i32 = arith.constant 0 : i32
    %c0_i32_0 = arith.constant 0 : i32
    return %arg0, %c0_i32, %arg1 : i32, i32, i32
  }
}

</mosaic_0001>

<llo_original>
// kernel: tpu_custom_call.1
$region0: #{tpu_custom_call.1}
  #allocation0 [shape = 'u32[]', space=smem, size = 0x4, offset = 0x4, fixed_abs, tag = 'smem constant byte address 0x4 - core index']
  #allocation1 [shape = 'u32[144,128]{1,0:T(1,128)}', space=vmem, size = 0x12000, scoped, tag = 'internal scratch']
  %s0 = inlined_call_operand.vmem [shape: f32[2,128,32], index: 0, kind: input, shape index: {}]
  %s1 = inlined_call_operand.vmem [shape: f32[2,64,32], index: 1, kind: input, shape index: {}]
  %s2 = inlined_call_operand.hbm [shape: f32[2,4,128], index: 2, kind: output, shape index: {0}]
  %s3 = inlined_call_operand.hbm [shape: s32[2,4,128], index: 3, kind: output, shape index: {1}]
  %4 = xla_tuple %s2, %s3
  %s5 = sld [smem:[#allocation0]]
  $region49: #{tpu_custom_call.1} parent=0
    _
  %s7 = ssub.s32 1, %s5
  %s8 = scalar_select 0, %s7, %s5
  $region1: #{tpu_custom_call.1} parent=0
    #allocation2 [shape = 'u8[4096]{0}', space=vmem, size = 0x1000, scoped, tag = 'output window, operand 0']
    #allocation3 [shape = 's32[2]{0}', space=sflag, size = 0x8, scoped, tag = 'scoped memory for tpu_custom_call.1']
    #allocation4 [shape = 'u8[4096]{0}', space=vmem, size = 0x1000, scoped, tag = 'output window, operand 1']
    #allocation5 [shape = 's32[2]{0}', space=sflag, size = 0x8, scoped, tag = 'scoped memory for tpu_custom_call.1']
    %9 = vsyncpa [#allocation3], 0
    %s10 = scalar_lea.sflag [#allocation3], 1
    %11 = vsyncpa %s10, 0
    %12 = vsyncpa [#allocation5], 0
    %s13 = scalar_lea.sflag [#allocation5], 1
    %14 = vsyncpa %s13, 0
    loop: start=0, step=1, limit=4
    $region2: #{tpu_custom_call.1} parent=1 // loop_pre_header
      _
    $region3: #{tpu_custom_call.1} parent=1 // loop_header
      %s16 = sphi 0, %s20
      %p17 = scmp.ge.s32.totalorder %s16, 4
      %s23 = sphi 0, %s35
      %s24 = sphi 0, %s31
      %s25 = sphi 0, %s23
      %s26 = sphi 0, %s24
      %s27 = sphi 0, %s25
      %s28 = sphi 0, %s26
      %s40 = sphi 0, %s42
      %s43 = sphi 0, %s40
      %s44 = sphi 0, %s43
      %s60 = sphi 0, %s44
      %s66 = sphi 0, %s68
      %s69 = sphi 0, %s66
      %s70 = sphi 0, %s69
      %s86 = sphi 0, %s70
      %s94 = sphi 0, %s96
      %s97 = sphi 0, %s94
      %s98 = sphi 0, %s97
      %s114 = sphi 0, %s98
      %s122 = sphi 0, %s124
      %s125 = sphi 0, %s122
      %s126 = sphi 0, %s125
      %s142 = sphi 0, %s126
    $region4: #{tpu_custom_call.1} parent=1 // loop_header_branch
      %19 = sbr.rel (%p17) target = $region8
    $region5: #{tpu_custom_call.1} parent=1 // loop_body
      %s21 = ssub.s32 %s16, 1
      %s22 = ssub.s32 %s16, 2
      %s29 = sadd.s32 1, %s24
      %p30 = scmp.ge.s32.totalorder %s29, 1
      %s31 = scalar_select %p30, 0, %s29
      %s32 = sadd.s32 1, %s23
      %s33 = scalar_select %p30, %s32, %s23
      %p34 = scmp.ge.s32.totalorder %s33, 2
      %s35 = scalar_select %p34, 0, %s33
      %s36 = ssub.s32 %s23, %s35
      %s37 = ssub.s32 %s24, %s31
      %s38 = sor.u32 %s36, %s37
      %p39 = scmp.eq.s32.totalorder %s38, 0
      %s41 = sadd.s32 %s40, 1
      %s42 = scalar_select %p39, %s40, %s41
      %p45 = pneg %p39
      %p46 = scmp.eq.s32.totalorder %s16, 1
      %p47 = por %p45, %p46
      %p48 = scmp.ne.s32.totalorder %s40, %s43
      %p49 = scmp.eq.s32.totalorder %s16, 0
      %p50 = por %p48, %p49
      %p51 = scmp.ne.s32.totalorder %s40, %s43
      %p52 = scmp.eq.s32.totalorder %s21, 1
      %p53 = por %p51, %p52
      %p54 = scmp.ne.s32.totalorder %s43, %s44
      %p55 = scmp.eq.s32.totalorder %s21, 0
      %p56 = por %p54, %p55
      %p57 = scmp.ne.s32.totalorder %s43, %s44
      %p58 = scmp.eq.s32.totalorder %s22, 1
      %p59 = por %p57, %p58
      %p61 = scmp.ne.s32.totalorder %s44, %s60
      %p62 = scmp.eq.s32.totalorder %s22, 0
      %p63 = por %p61, %p62
      %s64 = ssub.s32 %s23, %s35
      %p65 = scmp.eq.s32.totalorder %s64, 0
      %s67 = sadd.s32 %s66, 1
      %s68 = scalar_select %p65, %s66, %s67
      %p71 = pneg %p65
      %p72 = scmp.eq.s32.totalorder %s16, 1
      %p73 = por %p71, %p72
      %p74 = scmp.ne.s32.totalorder %s66, %s69
      %p75 = scmp.eq.s32.totalorder %s16, 0
      %p76 = por %p74, %p75
      %p77 = scmp.ne.s32.totalorder %s66, %s69
      %p78 = scmp.eq.s32.totalorder %s21, 1
      %p79 = por %p77, %p78
      %p80 = scmp.ne.s32.totalorder %s69, %s70
      %p81 = scmp.eq.s32.totalorder %s21, 0
      %p82 = por %p80, %p81
      %p83 = scmp.ne.s32.totalorder %s69, %s70
      %p84 = scmp.eq.s32.totalorder %s22, 1
      %p85 = por %p83, %p84
      %p87 = scmp.ne.s32.totalorder %s70, %s86
      %p88 = scmp.eq.s32.totalorder %s22, 0
      %p89 = por %p87, %p88
      %s90 = ssub.s32 %s23, %s35
      %s91 = ssub.s32 %s24, %s31
      %s92 = sor.u32 %s90, %s91
      %p93 = scmp.eq.s32.totalorder %s92, 0
      %s95 = sadd.s32 %s94, 1
      %s96 = scalar_select %p93, %s94, %s95
      %p99 = pneg %p93
      %p100 = scmp.eq.s32.totalorder %s16, 1
      %p101 = por %p99, %p100
      %p102 = scmp.ne.s32.totalorder %s94, %s97
      %p103 = scmp.eq.s32.totalorder %s16, 0
      %p104 = por %p102, %p103
      %p105 = scmp.ne.s32.totalorder %s94, %s97
      %p106 = scmp.eq.s32.totalorder %s21, 1
      %p107 = por %p105, %p106
      %p108 = scmp.ne.s32.totalorder %s97, %s98
      %p109 = scmp.eq.s32.totalorder %s21, 0
      %p110 = por %p108, %p109
      %p111 = scmp.ne.s32.totalorder %s97, %s98
      %p112 = scmp.eq.s32.totalorder %s22, 1
      %p113 = por %p111, %p112
      %p115 = scmp.ne.s32.totalorder %s98, %s114
      %p116 = scmp.eq.s32.totalorder %s22, 0
      %p117 = por %p115, %p116
      %s118 = ssub.s32 %s23, %s35
      %s119 = ssub.s32 %s24, %s31
      %s120 = sor.u32 %s118, %s119
      %p121 = scmp.eq.s32.totalorder %s120, 0
      %s123 = sadd.s32 %s122, 1
      %s124 = scalar_select %p121, %s122, %s123
      %p127 = pneg %p121
      %p128 = scmp.eq.s32.totalorder %s16, 1
      %p129 = por %p127, %p128
      %p130 = scmp.ne.s32.totalorder %s122, %s125
      %p131 = scmp.eq.s32.totalorder %s16, 0
      %p132 = por %p130, %p131
      %p133 = scmp.ne.s32.totalorder %s122, %s125
      %p134 = scmp.eq.s32.totalorder %s21, 1
      %p135 = por %p133, %p134
      %p136 = scmp.ne.s32.totalorder %s125, %s126
      %p137 = scmp.eq.s32.totalorder %s21, 0
      %p138 = por %p136, %p137
      %p139 = scmp.ne.s32.totalorder %s125, %s126
      %p140 = scmp.eq.s32.totalorder %s22, 1
      %p141 = por %p139, %p140
      %p143 = scmp.ne.s32.totalorder %s126, %s142
      %p144 = scmp.eq.s32.totalorder %s22, 0
      %p145 = por %p143, %p144
      %p146 = scmp.le.s32.totalorder 1, %s16
      %p147 = scmp.lt.s32.totalorder %s16, 3
      %p148 = pnand %p146, %p147
      %p149 = pneg %p148
      // Predicated region
      $region9: #{tpu_custom_call.1} parent=5 // pred_check
        _
      $region10: #{tpu_custom_call.1} parent=5 // pred_check_branch
        %151 = sbr.rel (%p148) target = $region12
      $region11: #{tpu_custom_call.1} parent=5 // pred_region
        %s152 = ssub.s32 %s16, 1
      $region12: #{tpu_custom_call.1} parent=5 // pred_fallthru
        _
      %p153 = scmp.lt.s32.totalorder %s16, 2
      // Predicated region
      $region13: #{tpu_custom_call.1} parent=5 // pred_check
        %p154 = pneg %p153
      $region14: #{tpu_custom_call.1} parent=5 // pred_check_branch
        %156 = sbr.rel (%p154) target = $region16
      $region15: #{tpu_custom_call.1} parent=5 // pred_region
        // Predicated region
        $region17: #{tpu_custom_call.1} parent=15 // pred_check
          %p157 = pneg %p50
        $region18: #{tpu_custom_call.1} parent=15 // pred_check_branch
          %159 = sbr.rel (%p157) target = $region20
        $region19: #{tpu_custom_call.1} parent=15 // pred_region
          %s160 = smul.u32 16, %s24
          %p161 = scmp.lt.s32.totalorder %s23, 1
          %s162 = scalar_select %p161, %s23, 1
          %p163 = scmp.lt.s32.totalorder %s160, 15
          %s164 = scalar_select %p163, %s160, 15
          %s165 = smul.addr %s162, 16
          %s166 = sadd.s32 %s164, %s165
          %s167 = smul.addr %s166, 8
          %s168 = scalar_lea.vmem %s0, %s167
          %s169 = smul.u32 16, %s24
        $region20: #{tpu_custom_call.1} parent=15 // pred_fallthru
          _
        // Predicated region
        $region21: #{tpu_custom_call.1} parent=15 // pred_check
          %p170 = pneg %p76
        $region22: #{tpu_custom_call.1} parent=15 // pred_check_branch
          %172 = sbr.rel (%p170) target = $region24
        $region23: #{tpu_custom_call.1} parent=15 // pred_region
          %p173 = scmp.lt.s32.totalorder %s23, 1
          %s174 = scalar_select %p173, %s23, 1
          %s175 = smul.addr %s174, 8
          %s176 = smul.addr %s175, 8
          %s177 = scalar_lea.vmem %s1, %s176
        $region24: #{tpu_custom_call.1} parent=15 // pred_fallthru
          _
      $region16: #{tpu_custom_call.1} parent=5 // pred_fallthru
        _
      %p178 = scmp.le.s32.totalorder 1, %s16
      %p179 = scmp.lt.s32.totalorder %s16, 3
      %p180 = pnand %p178, %p179
      %p181 = pneg %p180
      // Predicated region
      $region25: #{tpu_custom_call.1} parent=5 // pred_check
        _
      $region26: #{tpu_custom_call.1} parent=5 // pred_check_branch
        %183 = sbr.rel (%p180) target = $region28
      $region27: #{tpu_custom_call.1} parent=5 // pred_region
        %s184 = ssub.s32 %s16, 1
        %s185 = smul.u32 16, %s26
        %p186 = scmp.lt.s32.totalorder %s25, 1
        %s187 = scalar_select %p186, %s25, 1
        %p188 = scmp.lt.s32.totalorder %s185, 15
        %s189 = scalar_select %p188, %s185, 15
        %s190 = smul.addr %s187, 16
        %s191 = sadd.s32 %s189, %s190
        %s192 = smul.addr %s191, 8
        %s193 = scalar_lea.vmem %s0, %s192
        %p194 = pneg %p56
        %p195 = pneg %p53
        %p196 = scmp.lt.s32.totalorder %s25, 1
        %s197 = scalar_select %p196, %s25, 1
        %s198 = smul.addr %s197, 8
        %s199 = smul.addr %s198, 8
        %s200 = scalar_lea.vmem %s1, %s199
        %p201 = pneg %p82
        %p202 = pneg %p79
        %p203 = pneg %p110
        %p204 = pneg %p107
        %s205 = sand.u32 %s97, 1
        %s206 = scalar_lea.sflag [#allocation3], %s205
        %s207 = sand.u32 %s97, 1
        %s208 = smul.addr %s207, 4
        %s209 = scalar_lea.vmem [#allocation2], %s208
        %p210 = pneg %p138
        %p211 = pneg %p135
        %s212 = sand.u32 %s125, 1
        %s213 = scalar_lea.sflag [#allocation5], %s212
        %s214 = sand.u32 %s125, 1
        %s215 = smul.addr %s214, 4
        %s216 = scalar_lea.vmem [#allocation4], %s215
        %s217 = smul.u32 16, %s26
        %p218 = scmp.lt.s32.totalorder %s25, 1
        %s219 = scalar_select %p218, %s25, 1
        %p220 = scmp.lt.s32.totalorder %s217, 15
        %s221 = scalar_select %p220, %s217, 15
        %s222 = smul.addr %s219, 16
        %s223 = sadd.s32 %s221, %s222
        %s224 = smul.addr %s223, 8
        %s225 = scalar_lea.vmem %s0, %s224
        %s226 = smul.u32 16, %s26
        %p227 = scmp.lt.s32.totalorder %s25, 1
        %s228 = scalar_select %p227, %s25, 1
        %s229 = smul.addr %s228, 8
        %s230 = smul.addr %s229, 8
        %s231 = scalar_lea.vmem %s1, %s230
        %v232 = vlaneseq
        %v233 = vshrl.u32 %v232, 7
        %v234 = vadd.s32 %v233, 8
        %v235 = vadd.s32 %v233, 16
        %v236 = vadd.s32 %v233, 24
        %v237 = vadd.s32 %v233, 32
        %v238 = vadd.s32 %v233, 40
        %v239 = vadd.s32 %v233, 48
        %v240 = vadd.s32 %v233, 56
        %v241 = vld [vmem:[%s225] sm:$0xff]
        %v242 = vld [vmem:[%s225 + $0x8] sm:$0xff]
        %v243 = vld [vmem:[%s225 + $0x10] sm:$0xff]
        %v244 = vld [vmem:[%s225 + $0x18] sm:$0xff]
        %v245 = vld [vmem:[%s225 + $0x20] sm:$0xff]
        %v246 = vld [vmem:[%s225 + $0x28] sm:$0xff]
        %v247 = vld [vmem:[%s225 + $0x30] sm:$0xff]
        %v248 = vld [vmem:[%s225 + $0x38] sm:$0xff]
        %v249 = vld [vmem:[%s225 + $0x40] sm:$0xff]
        %v250 = vld [vmem:[%s225 + $0x48] sm:$0xff]
        %v251 = vld [vmem:[%s225 + $0x50] sm:$0xff]
        %v252 = vld [vmem:[%s225 + $0x58] sm:$0xff]
        %v253 = vld [vmem:[%s225 + $0x60] sm:$0xff]
        %v254 = vld [vmem:[%s225 + $0x68] sm:$0xff]
        %v255 = vld [vmem:[%s225 + $0x70] sm:$0xff]
        %v256 = vld [vmem:[%s225 + $0x78] sm:$0xff]
        %v257 = vld [vmem:[%s231] sm:$0xff]
        %v258 = vld [vmem:[%s231 + $0x8] sm:$0xff]
        %v259 = vld [vmem:[%s231 + $0x10] sm:$0xff]
        %v260 = vld [vmem:[%s231 + $0x18] sm:$0xff]
        %v261 = vld [vmem:[%s231 + $0x20] sm:$0xff]
        %v262 = vld [vmem:[%s231 + $0x28] sm:$0xff]
        %v263 = vld [vmem:[%s231 + $0x30] sm:$0xff]
        %v264 = vld [vmem:[%s231 + $0x38] sm:$0xff]
        %vm265 = vcmask 261120
        %v267 = vsel %vm265, %v257, 0
        %v270 = vsel %vm265, %v258, 0
        %v273 = vsel %vm265, %v259, 0
        %v276 = vsel %vm265, %v260, 0
        %v279 = vsel %vm265, %v261, 0
        %v282 = vsel %vm265, %v262, 0
        %v285 = vsel %vm265, %v263, 0
        %v288 = vsel %vm265, %v264, 0
        %v291 = vsel %vm265, %v241, 0
        %v294 = vsel %vm265, %v242, 0
        %v297 = vsel %vm265, %v243, 0
        %v300 = vsel %vm265, %v244, 0
        %v303 = vsel %vm265, %v245, 0
        %v306 = vsel %vm265, %v246, 0
        %v309 = vsel %vm265, %v247, 0
        %v312 = vsel %vm265, %v248, 0
        %v315 = vsel %vm265, %v249, 0
        %v318 = vsel %vm265, %v250, 0
        %v321 = vsel %vm265, %v251, 0
        %v324 = vsel %vm265, %v252, 0
        %v327 = vsel %vm265, %v253, 0
        %v330 = vsel %vm265, %v254, 0
        %v333 = vsel %vm265, %v255, 0
        %v336 = vsel %vm265, %v256, 0
        %338 = vmatprep.subr.mxu0 0.0
        %339 = vmatpush1.xpose.msra.mxu0 %v336
        %340 = vmatprep.subr.mxu0 0.0
        %341 = vmatpush1.xpose.msra.mxu0 %v333
        %342 = vmatprep.subr.mxu0 0.0
        %343 = vmatpush1.xpose.msra.mxu0 %v330
        %344 = vmatprep.subr.mxu0 0.0
        %345 = vmatpush1.xpose.msra.mxu0 %v327
        %346 = vmatprep.subr.mxu0 0.0
        %347 = vmatpush1.xpose.msra.mxu0 %v324
        %348 = vmatprep.subr.mxu0 0.0
        %349 = vmatpush1.xpose.msra.mxu0 %v321
        %350 = vmatprep.subr.mxu0 0.0
        %351 = vmatpush1.xpose.msra.mxu0 %v318
        %352 = vmatprep.subr.mxu0 0.0
        %353 = vmatpush1.xpose.msra.mxu0 %v315
        %354 = vmatprep.subr.mxu0 0.0
        %355 = vmatpush1.xpose.msra.mxu0 %v312
        %356 = vmatprep.subr.mxu0 0.0
        %357 = vmatpush1.xpose.msra.mxu0 %v309
        %358 = vmatprep.subr.mxu0 0.0
        %359 = vmatpush1.xpose.msra.mxu0 %v306
        %360 = vmatprep.subr.mxu0 0.0
        %361 = vmatpush1.xpose.msra.mxu0 %v303
        %362 = vmatprep.subr.mxu0 0.0
        %363 = vmatpush1.xpose.msra.mxu0 %v300
        %364 = vmatprep.subr.mxu0 0.0
        %365 = vmatpush1.xpose.msra.mxu0 %v297
        %366 = vmatprep.subr.mxu0 0.0
        %367 = vmatpush1.xpose.msra.mxu0 %v294
        %368 = vmatprep.subr.mxu0 0.0
        %369 = vmatpush1.xpose.msra.mxu0 %v291
        %370 = vmatprep.subr.mxu0 0.0
        %371 = vmatpush2.xpose.msra.mxu0 0.0
        %372 = vmatprep.subr.mxu0 0.0
        %373 = vmatpush2.xpose.msra.mxu0 0.0
        %374 = vmatprep.subr.mxu0 0.0
        %375 = vmatpush2.xpose.msra.mxu0 0.0
        %376 = vmatprep.subr.mxu0 0.0
        %377 = vmatpush2.xpose.msra.mxu0 0.0
        %378 = vmatprep.subr.mxu0 0.0
        %379 = vmatpush2.xpose.msra.mxu0 0.0
        %380 = vmatprep.subr.mxu0 0.0
        %381 = vmatpush2.xpose.msra.mxu0 0.0
        %382 = vmatprep.subr.mxu0 0.0
        %383 = vmatpush2.xpose.msra.mxu0 0.0
        %384 = vmatprep.subr.mxu0 0.0
        %385 = vmatpush2.xpose.msra.mxu0 0.0
        %386 = vmatprep.subr.mxu0 0.0
        %387 = vmatpush2.xpose.msra.mxu0 0.0
        %388 = vmatprep.subr.mxu0 0.0
        %389 = vmatpush2.xpose.msra.mxu0 0.0
        %390 = vmatprep.subr.mxu0 0.0
        %391 = vmatpush2.xpose.msra.mxu0 0.0
        %392 = vmatprep.subr.mxu0 0.0
        %393 = vmatpush2.xpose.msra.mxu0 0.0
        %394 = vmatprep.subr.mxu0 0.0
        %395 = vmatpush2.xpose.msra.mxu0 0.0
        %396 = vmatprep.subr.mxu0 0.0
        %397 = vmatpush2.xpose.msra.mxu0 0.0
        %398 = vmatprep.subr.mxu0 0.0
        %399 = vmatpush2.xpose.msra.mxu0 0.0
        %400 = vmatprep.subr.mxu0 0.0
        %401 = vmatpush2.xpose.msra.mxu0 0.0
        %402 = vmatprep.mubr.f32.mxu0 0.0
        %403 = vmatmul.mubr.f32.gmra.mxu0 %v267
        %v404 = vpop.f32.mrf.mxu0
        %v405 = vadd.f32 0.0, %v404
        %v406 = vpop.f32.mrf.mxu0
        %407 = vmatprep.mubr.f32.mxu0 0.0
        %408 = vmatmul.mubr.f32.gmra.mxu0 %v270
        %v409 = vpop.f32.mrf.mxu0
        %v410 = vadd.f32 0.0, %v409
        %v411 = vpop.f32.mrf.mxu0
        %412 = vmatprep.mubr.f32.mxu0 0.0
        %413 = vmatmul.mubr.f32.gmra.mxu0 %v273
        %v414 = vpop.f32.mrf.mxu0
        %v415 = vadd.f32 0.0, %v414
        %v416 = vpop.f32.mrf.mxu0
        %417 = vmatprep.mubr.f32.mxu0 0.0
        %418 = vmatmul.mubr.f32.gmra.mxu0 %v276
        %v419 = vpop.f32.mrf.mxu0
        %v420 = vadd.f32 0.0, %v419
        %v421 = vpop.f32.mrf.mxu0
        %422 = vmatprep.mubr.f32.mxu0 0.0
        %423 = vmatmul.mubr.f32.gmra.mxu0 %v279
        %v424 = vpop.f32.mrf.mxu0
        %v425 = vadd.f32 0.0, %v424
        %v426 = vpop.f32.mrf.mxu0
        %427 = vmatprep.mubr.f32.mxu0 0.0
        %428 = vmatmul.mubr.f32.gmra.mxu0 %v282
        %v429 = vpop.f32.mrf.mxu0
        %v430 = vadd.f32 0.0, %v429
        %v431 = vpop.f32.mrf.mxu0
        %432 = vmatprep.mubr.f32.mxu0 0.0
        %433 = vmatmul.mubr.f32.gmra.mxu0 %v285
        %v434 = vpop.f32.mrf.mxu0
        %v435 = vadd.f32 0.0, %v434
        %v436 = vpop.f32.mrf.mxu0
        %437 = vmatprep.mubr.f32.mxu0 0.0
        %438 = vmatmul.mubr.f32.gmra.mxu0 %v288
        %v439 = vpop.f32.mrf.mxu0
        %v440 = vadd.f32 0.0, %v439
        %v441 = vpop.f32.mrf.mxu0
        %442 = vdwg.mxu0
        %v443 = vmax.f32 %v405, %v425
        %v444 = vmax.f32 %v410, %v430
        %v445 = vmax.f32 %v415, %v435
        %v446 = vmax.f32 %v420, %v440
        %v447 = vmax.f32 %v443, %v444
        %v448 = vmax.f32 %v445, %v446
        %v449 = vmax.f32 %v447, %v448
        %v450 = vrot.slane %v449, 4
        %v451 = vmax.f32 %v449, %v450
        %v452 = vrot.slane %v451, 2
        %v453 = vmax.f32 %v451, %v452
        %v454 = vrot.slane %v453, 1
        %v455 = vmax.f32 %v453, %v454
        %vm456 = vcmp.eq.f32.partialorder %v405, %v455
        %vm457 = vcmp.eq.f32.partialorder %v410, %v455
        %vm458 = vcmp.eq.f32.partialorder %v415, %v455
        %vm459 = vcmp.eq.f32.partialorder %v420, %v455
        %vm460 = vcmp.eq.f32.partialorder %v425, %v455
        %vm461 = vcmp.eq.f32.partialorder %v430, %v455
        %vm462 = vcmp.eq.f32.partialorder %v435, %v455
        %vm463 = vcmp.eq.f32.partialorder %v440, %v455
        %v464 = vsel %vm456, %v233, 2147483647
        %v465 = vsel %vm457, %v234, 2147483647
        %v466 = vsel %vm458, %v235, 2147483647
        %v467 = vsel %vm459, %v236, 2147483647
        %v468 = vsel %vm460, %v237, 2147483647
        %v469 = vsel %vm461, %v238, 2147483647
        %v470 = vsel %vm462, %v239, 2147483647
        %v471 = vsel %vm463, %v240, 2147483647
        %vm472 = vcmp.lt.s32.totalorder %v464, %v468
        %v473 = vsel %vm472, %v464, %v468
        %vm474 = vcmp.lt.s32.totalorder %v465, %v469
        %v475 = vsel %vm474, %v465, %v469
        %vm476 = vcmp.lt.s32.totalorder %v466, %v470
        %v477 = vsel %vm476, %v466, %v470
        %vm478 = vcmp.lt.s32.totalorder %v467, %v471
        %v479 = vsel %vm478, %v467, %v471
        %vm480 = vcmp.lt.s32.totalorder %v473, %v475
        %v481 = vsel %vm480, %v473, %v475
        %vm482 = vcmp.lt.s32.totalorder %v477, %v479
        %v483 = vsel %vm482, %v477, %v479
        %vm484 = vcmp.lt.s32.totalorder %v481, %v483
        %v485 = vsel %vm484, %v481, %v483
        %v486 = vrot.slane %v485, 4
        %vm487 = vcmp.lt.s32.totalorder %v485, %v486
        %v488 = vsel %vm487, %v485, %v486
        %v489 = vrot.slane %v488, 2
        %vm490 = vcmp.lt.s32.totalorder %v488, %v489
        %v491 = vsel %vm490, %v488, %v489
        %v492 = vrot.slane %v491, 1
        %vm493 = vcmp.lt.s32.totalorder %v491, %v492
        %v494 = vsel %vm493, %v491, %v492
        %vm495 = vcmp.eq.s32.totalorder %v233, %v494
        %vm496 = vcmp.eq.s32.totalorder %v234, %v494
        %vm497 = vcmp.eq.s32.totalorder %v235, %v494
        %vm498 = vcmp.eq.s32.totalorder %v236, %v494
        %vm499 = vcmp.eq.s32.totalorder %v237, %v494
        %vm500 = vcmp.eq.s32.totalorder %v238, %v494
        %vm501 = vcmp.eq.s32.totalorder %v239, %v494
        %vm502 = vcmp.eq.s32.totalorder %v240, %v494
        %v503 = vsel %vm495, -inf, %v405
        %v504 = vsel %vm496, -inf, %v410
        %v505 = vsel %vm497, -inf, %v415
        %v506 = vsel %vm498, -inf, %v420
        %v507 = vsel %vm499, -inf, %v425
        %v508 = vsel %vm500, -inf, %v430
        %v509 = vsel %vm501, -inf, %v435
        %v510 = vsel %vm502, -inf, %v440
        %v511 = vmax.f32 %v503, %v507
        %v512 = vmax.f32 %v504, %v508
        %v513 = vmax.f32 %v505, %v509
        %v514 = vmax.f32 %v506, %v510
        %v515 = vmax.f32 %v511, %v512
        %v516 = vmax.f32 %v513, %v514
        %v517 = vmax.f32 %v515, %v516
        %v518 = vrot.slane %v517, 4
        %v519 = vmax.f32 %v517, %v518
        %v520 = vrot.slane %v519, 2
        %v521 = vmax.f32 %v519, %v520
        %v522 = vrot.slane %v521, 1
        %v523 = vmax.f32 %v521, %v522
        %vm524 = vcmp.eq.f32.partialorder %v503, %v523
        %vm525 = vcmp.eq.f32.partialorder %v504, %v523
        %vm526 = vcmp.eq.f32.partialorder %v505, %v523
        %vm527 = vcmp.eq.f32.partialorder %v506, %v523
        %vm528 = vcmp.eq.f32.partialorder %v507, %v523
        %vm529 = vcmp.eq.f32.partialorder %v508, %v523
        %vm530 = vcmp.eq.f32.partialorder %v509, %v523
        %vm531 = vcmp.eq.f32.partialorder %v510, %v523
        %v532 = vsel %vm524, %v233, 2147483647
        %v533 = vsel %vm525, %v234, 2147483647
        %v534 = vsel %vm526, %v235, 2147483647
        %v535 = vsel %vm527, %v236, 2147483647
        %v536 = vsel %vm528, %v237, 2147483647
        %v537 = vsel %vm529, %v238, 2147483647
        %v538 = vsel %vm530, %v239, 2147483647
        %v539 = vsel %vm531, %v240, 2147483647
        %vm540 = vcmp.lt.s32.totalorder %v532, %v536
        %v541 = vsel %vm540, %v532, %v536
        %vm542 = vcmp.lt.s32.totalorder %v533, %v537
        %v543 = vsel %vm542, %v533, %v537
        %vm544 = vcmp.lt.s32.totalorder %v534, %v538
        %v545 = vsel %vm544, %v534, %v538
        %vm546 = vcmp.lt.s32.totalorder %v535, %v539
        %v547 = vsel %vm546, %v535, %v539
        %vm548 = vcmp.lt.s32.totalorder %v541, %v543
        %v549 = vsel %vm548, %v541, %v543
        %vm550 = vcmp.lt.s32.totalorder %v545, %v547
        %v551 = vsel %vm550, %v545, %v547
        %vm552 = vcmp.lt.s32.totalorder %v549, %v551
        %v553 = vsel %vm552, %v549, %v551
        %v554 = vrot.slane %v553, 4
        %vm555 = vcmp.lt.s32.totalorder %v553, %v554
        %v556 = vsel %vm555, %v553, %v554
        %v557 = vrot.slane %v556, 2
        %vm558 = vcmp.lt.s32.totalorder %v556, %v557
        %v559 = vsel %vm558, %v556, %v557
        %v560 = vrot.slane %v559, 1
        %vm561 = vcmp.lt.s32.totalorder %v559, %v560
        %v562 = vsel %vm561, %v559, %v560
        %vm563 = vcmp.eq.s32.totalorder %v233, %v562
        %vm564 = vcmp.eq.s32.totalorder %v234, %v562
        %vm565 = vcmp.eq.s32.totalorder %v235, %v562
        %vm566 = vcmp.eq.s32.totalorder %v236, %v562
        %vm567 = vcmp.eq.s32.totalorder %v237, %v562
        %vm568 = vcmp.eq.s32.totalorder %v238, %v562
        %vm569 = vcmp.eq.s32.totalorder %v239, %v562
        %vm570 = vcmp.eq.s32.totalorder %v240, %v562
        %v571 = vsel %vm563, -inf, %v503
        %v572 = vsel %vm564, -inf, %v504
        %v573 = vsel %vm565, -inf, %v505
        %v574 = vsel %vm566, -inf, %v506
        %v575 = vsel %vm567, -inf, %v507
        %v576 = vsel %vm568, -inf, %v508
        %v577 = vsel %vm569, -inf, %v509
        %v578 = vsel %vm570, -inf, %v510
        %v579 = vmax.f32 %v571, %v575
        %v580 = vmax.f32 %v572, %v576
        %v581 = vmax.f32 %v573, %v577
        %v582 = vmax.f32 %v574, %v578
        %v583 = vmax.f32 %v579, %v580
        %v584 = vmax.f32 %v581, %v582
        %v585 = vmax.f32 %v583, %v584
        %v586 = vrot.slane %v585, 4
        %v587 = vmax.f32 %v585, %v586
        %v588 = vrot.slane %v587, 2
        %v589 = vmax.f32 %v587, %v588
        %v590 = vrot.slane %v589, 1
        %v591 = vmax.f32 %v589, %v590
        %vm592 = vcmp.eq.f32.partialorder %v571, %v591
        %vm593 = vcmp.eq.f32.partialorder %v572, %v591
        %vm594 = vcmp.eq.f32.partialorder %v573, %v591
        %vm595 = vcmp.eq.f32.partialorder %v574, %v591
        %vm596 = vcmp.eq.f32.partialorder %v575, %v591
        %vm597 = vcmp.eq.f32.partialorder %v576, %v591
        %vm598 = vcmp.eq.f32.partialorder %v577, %v591
        %vm599 = vcmp.eq.f32.partialorder %v578, %v591
        %v600 = vsel %vm592, %v233, 2147483647
        %v601 = vsel %vm593, %v234, 2147483647
        %v602 = vsel %vm594, %v235, 2147483647
        %v603 = vsel %vm595, %v236, 2147483647
        %v604 = vsel %vm596, %v237, 2147483647
        %v605 = vsel %vm597, %v238, 2147483647
        %v606 = vsel %vm598, %v239, 2147483647
        %v607 = vsel %vm599, %v240, 2147483647
        %vm608 = vcmp.lt.s32.totalorder %v600, %v604
        %v609 = vsel %vm608, %v600, %v604
        %vm610 = vcmp.lt.s32.totalorder %v601, %v605
        %v611 = vsel %vm610, %v601, %v605
        %vm612 = vcmp.lt.s32.totalorder %v602, %v606
        %v613 = vsel %vm612, %v602, %v606
        %vm614 = vcmp.lt.s32.totalorder %v603, %v607
        %v615 = vsel %vm614, %v603, %v607
        %vm616 = vcmp.lt.s32.totalorder %v609, %v611
        %v617 = vsel %vm616, %v609, %v611
        %vm618 = vcmp.lt.s32.totalorder %v613, %v615
        %v619 = vsel %vm618, %v613, %v615
        %vm620 = vcmp.lt.s32.totalorder %v617, %v619
        %v621 = vsel %vm620, %v617, %v619
        %v622 = vrot.slane %v621, 4
        %vm623 = vcmp.lt.s32.totalorder %v621, %v622
        %v624 = vsel %vm623, %v621, %v622
        %v625 = vrot.slane %v624, 2
        %vm626 = vcmp.lt.s32.totalorder %v624, %v625
        %v627 = vsel %vm626, %v624, %v625
        %v628 = vrot.slane %v627, 1
        %vm629 = vcmp.lt.s32.totalorder %v627, %v628
        %v630 = vsel %vm629, %v627, %v628
        %vm631 = vcmp.eq.s32.totalorder %v233, %v630
        %vm632 = vcmp.eq.s32.totalorder %v234, %v630
        %vm633 = vcmp.eq.s32.totalorder %v235, %v630
        %vm634 = vcmp.eq.s32.totalorder %v236, %v630
        %vm635 = vcmp.eq.s32.totalorder %v237, %v630
        %vm636 = vcmp.eq.s32.totalorder %v238, %v630
        %vm637 = vcmp.eq.s32.totalorder %v239, %v630
        %vm638 = vcmp.eq.s32.totalorder %v240, %v630
        %v639 = vsel %vm631, -inf, %v571
        %v640 = vsel %vm632, -inf, %v572
        %v641 = vsel %vm633, -inf, %v573
        %v642 = vsel %vm634, -inf, %v574
        %v643 = vsel %vm635, -inf, %v575
        %v644 = vsel %vm636, -inf, %v576
        %v645 = vsel %vm637, -inf, %v577
        %v646 = vsel %vm638, -inf, %v578
        %v647 = vmax.f32 %v639, %v643
        %v648 = vmax.f32 %v640, %v644
        %v649 = vmax.f32 %v641, %v645
        %v650 = vmax.f32 %v642, %v646
        %v651 = vmax.f32 %v647, %v648
        %v652 = vmax.f32 %v649, %v650
        %v653 = vmax.f32 %v651, %v652
        %v654 = vrot.slane %v653, 4
        %v655 = vmax.f32 %v653, %v654
        %v656 = vrot.slane %v655, 2
        %v657 = vmax.f32 %v655, %v656
        %v658 = vrot.slane %v657, 1
        %v659 = vmax.f32 %v657, %v658
        %vm660 = vcmp.eq.f32.partialorder %v639, %v659
        %vm661 = vcmp.eq.f32.partialorder %v640, %v659
        %vm662 = vcmp.eq.f32.partialorder %v641, %v659
        %vm663 = vcmp.eq.f32.partialorder %v642, %v659
        %vm664 = vcmp.eq.f32.partialorder %v643, %v659
        %vm665 = vcmp.eq.f32.partialorder %v644, %v659
        %vm666 = vcmp.eq.f32.partialorder %v645, %v659
        %vm667 = vcmp.eq.f32.partialorder %v646, %v659
        %v668 = vsel %vm660, %v233, 2147483647
        %v669 = vsel %vm661, %v234, 2147483647
        %v670 = vsel %vm662, %v235, 2147483647
        %v671 = vsel %vm663, %v236, 2147483647
        %v672 = vsel %vm664, %v237, 2147483647
        %v673 = vsel %vm665, %v238, 2147483647
        %v674 = vsel %vm666, %v239, 2147483647
        %v675 = vsel %vm667, %v240, 2147483647
        %vm676 = vcmp.lt.s32.totalorder %v668, %v672
        %v677 = vsel %vm676, %v668, %v672
        %vm678 = vcmp.lt.s32.totalorder %v669, %v673
        %v679 = vsel %vm678, %v669, %v673
        %vm680 = vcmp.lt.s32.totalorder %v670, %v674
        %v681 = vsel %vm680, %v670, %v674
        %vm682 = vcmp.lt.s32.totalorder %v671, %v675
        %v683 = vsel %vm682, %v671, %v675
        %vm684 = vcmp.lt.s32.totalorder %v677, %v679
        %v685 = vsel %vm684, %v677, %v679
        %vm686 = vcmp.lt.s32.totalorder %v681, %v683
        %v687 = vsel %vm686, %v681, %v683
        %vm688 = vcmp.lt.s32.totalorder %v685, %v687
        %v689 = vsel %vm688, %v685, %v687
        %v690 = vrot.slane %v689, 4
        %vm691 = vcmp.lt.s32.totalorder %v689, %v690
        %v692 = vsel %vm691, %v689, %v690
        %v693 = vrot.slane %v692, 2
        %vm694 = vcmp.lt.s32.totalorder %v692, %v693
        %v695 = vsel %vm694, %v692, %v693
        %v696 = vrot.slane %v695, 1
        %vm697 = vcmp.lt.s32.totalorder %v695, %v696
        %v698 = vsel %vm697, %v695, %v696
        %vm699 = vcmask 1040384
        %v700 = vsel %vm699, %v455, %v523
        %vm701 = vcmask 1041408
        %v702 = vsel %vm701, %v700, %v591
        %vm703 = vcmask 1042432
        %v704 = vsel %vm703, %v702, %v659
        %v705 = vsel %vm699, %v494, %v562
        %v706 = vsel %vm701, %v705, %v630
        %v707 = vsel %vm703, %v706, %v698
        %v708 = vlaneseq
        %v709 = vshrl.u32 %v708, 7
        %v710 = vsub.s32 0, %v709
        %v711 = vrot.slane %v704, %v710
        %v712 = vsub.f32 %v704, %v711
        %v713 = vmul.f32 %v712, 0.17677669
        %v714 = vmul.f32 %v713, 1.442695
        %v715 = vpow.pop %v714
        %vm716 = vcmask 1043456
        %v717 = vsel %vm716, %v715, 0.0
        %v718 = vrot.slane %v717, 4
        %v719 = vadd.f32 %v717, %v718
        %v720 = vrot.slane %v719, 2
        %v721 = vadd.f32 %v719, %v720
        %v722 = vrot.slane %v721, 1
        %v723 = vadd.f32 %v721, %v722
        %v724 = vrcp.pop %v723
        %v725 = vmul.f32 %v715, %v724
        %726 = vst [vmem:[%s209] sm:$0xf] %v725
        %727 = vst [vmem:[%s216] sm:$0xf] %v707
        %s728 = sand.u32 %s97, 1
        %s729 = scalar_lea.sflag [#allocation3], %s728
        %s730 = sand.u32 %s97, 1
        %s731 = smul.addr %s730, 4
        %s732 = scalar_lea.vmem [#allocation2], %s731
        %s733 = sand.u32 %s125, 1
        %s734 = scalar_lea.sflag [#allocation5], %s733
        %s735 = sand.u32 %s125, 1
        %s736 = smul.addr %s735, 4
        %s737 = scalar_lea.vmem [#allocation4], %s736
        // Predicated region
        $region29: #{tpu_custom_call.1} parent=27 // pred_check
          %p738 = pneg %p107
        $region30: #{tpu_custom_call.1} parent=27 // pred_check_branch
          %740 = sbr.rel (%p738) target = $region32
        $region31: #{tpu_custom_call.1} parent=27 // pred_region
          %s742 = ssub.s32 64, 64
          %743 = vsyncadd %s729, %s742
          %s744 = sadd.s32 %s26, %s25
          %s745 = smul.addr %s744, 64
          %s746 = scalar_lea.hbm %s2, %s745
          %s748 = sshll.u32 %s732, 4
          %s749 = int_to_ptr.vmem [resolvable:$true] %s748
          %751 = dma.vmem_to_hbm [thread:$0]  %s749, 64, %s746, %s729
        $region32: #{tpu_custom_call.1} parent=27 // pred_fallthru
          _
        // Predicated region
        $region33: #{tpu_custom_call.1} parent=27 // pred_check
          %p752 = pneg %p135
        $region34: #{tpu_custom_call.1} parent=27 // pred_check_branch
          %754 = sbr.rel (%p752) target = $region36
        $region35: #{tpu_custom_call.1} parent=27 // pred_region
          %s756 = ssub.s32 64, 64
          %757 = vsyncadd %s734, %s756
          %s758 = sadd.s32 %s26, %s25
          %s759 = smul.addr %s758, 64
          %s760 = scalar_lea.hbm %s3, %s759
          %s762 = sshll.u32 %s737, 4
          %s763 = int_to_ptr.vmem [resolvable:$true] %s762
          %765 = dma.vmem_to_hbm [thread:$0]  %s763, 64, %s760, %s734
        $region36: #{tpu_custom_call.1} parent=27 // pred_fallthru
          _
      $region28: #{tpu_custom_call.1} parent=5 // pred_fallthru
        _
      %p766 = scmp.le.s32.totalorder 2, %s16
      // Predicated region
      $region37: #{tpu_custom_call.1} parent=5 // pred_check
        %p767 = pneg %p766
      $region38: #{tpu_custom_call.1} parent=5 // pred_check_branch
        %769 = sbr.rel (%p767) target = $region40
      $region39: #{tpu_custom_call.1} parent=5 // pred_region
        %s770 = ssub.s32 %s16, 2
        // Predicated region
        $region41: #{tpu_custom_call.1} parent=39 // pred_check
          %p771 = pneg %p113
        $region42: #{tpu_custom_call.1} parent=39 // pred_check_branch
          %773 = sbr.rel (%p771) target = $region44
        $region43: #{tpu_custom_call.1} parent=39 // pred_region
          %s774 = sand.u32 %s98, 1
          %s775 = scalar_lea.sflag [#allocation3], %s774
          %s776 = sand.u32 %s98, 1
          %s777 = smul.addr %s776, 4
          %s778 = scalar_lea.vmem [#allocation2], %s777
          %779 = dma.done %s775, 64
        $region44: #{tpu_custom_call.1} parent=39 // pred_fallthru
          _
        // Predicated region
        $region45: #{tpu_custom_call.1} parent=39 // pred_check
          %p780 = pneg %p141
        $region46: #{tpu_custom_call.1} parent=39 // pred_check_branch
          %782 = sbr.rel (%p780) target = $region48
        $region47: #{tpu_custom_call.1} parent=39 // pred_region
          %s783 = sand.u32 %s126, 1
          %s784 = scalar_lea.sflag [#allocation5], %s783
          %s785 = sand.u32 %s126, 1
          %s786 = smul.addr %s785, 4
          %s787 = scalar_lea.vmem [#allocation4], %s786
          %788 = dma.done %s784, 64
        $region48: #{tpu_custom_call.1} parent=39 // pred_fallthru
          _
      $region40: #{tpu_custom_call.1} parent=5 // pred_fallthru
        _
    $region6: #{tpu_custom_call.1} parent=1 // loop_footer
      %s20 = sadd.s32 1, %s16
    $region7: #{tpu_custom_call.1} parent=1 // loop_footer_branch
      %15 = sbr.rel target = $region3
    $region8: #{tpu_custom_call.1} parent=1 // loop_exit
      _
    %789 = vsyncpa [#allocation3], 1
    %s790 = scalar_lea.sflag [#allocation3], 1
    %791 = vsyncpa %s790, 1
    %792 = vsyncpa [#allocation5], 1
    %s793 = scalar_lea.sflag [#allocation5], 1
    %794 = vsyncpa %s793, 1

</llo_original>
